<compile_context>
chip_gen: v6e
topology: v6e:2x2x1
jax: 0.10.0
libtpu: 0.0.40
codegen_flags: <defaults>
</compile_context>

<pallas_src>
import math

import jax
import jax.numpy as jnp
from jax.experimental import pallas as pl
from jax.experimental.pallas import tpu as pltpu


def _attn_kernel(x_ref, w_ref, b_ref, o_ref):
    """x_ref: (Bblk, t, c). w_ref: (3, c, c). b_ref: (3, 1, c). o_ref: (Bblk, t, c)."""
    bblk, t, c = x_ref.shape
    in_dtype = x_ref.dtype

    # All Bblk batch elements share one tall QKV projection pass: (Bblk*t, c) @ (c, c).
    # Three separate dots on the stacked weights avoid slicing a (.., 3c) accumulator
    # across non-128 lane boundaries.
    x2d = x_ref[...].reshape(bblk * t, c)
    q = jnp.dot(x2d, w_ref[0], preferred_element_type=jnp.float32) + b_ref[0]
    k = jnp.dot(x2d, w_ref[1], preferred_element_type=jnp.float32) + b_ref[1]
    v = jnp.dot(x2d, w_ref[2], preferred_element_type=jnp.float32) + b_ref[2]
    # NOTE: the 1/sqrt(c) attention scale is already folded into w_ref[0] / b_ref[0]
    # (done once at param-pack time), so no score/q scaling happens here.

    # Keep MXU operands in the input dtype (bf16 -> full-rate MXU; f32 -> no-op cast),
    # accumulate in f32.
    q3 = q.reshape(bblk, t, c).astype(in_dtype)
    k3 = k.reshape(bblk, t, c).astype(in_dtype)
    v3 = v.reshape(bblk, t, c).astype(in_dtype)

    # Scores + max-subtracted exp. Normalization is deferred past the PV matmul so the
    # divide shrinks from t*t elements (VPU) to t (EUP reciprocal) + t*c (multiply).
    s = jnp.einsum('bqd,bkd->bqk', q3, k3,
                   preferred_element_type=jnp.float32)            # (Bblk, t, t) f32
    s = s - jnp.max(s, axis=-1, keepdims=True)
    p = jnp.exp(s)                                                # (Bblk, t, t) f32
    l = jnp.sum(p, axis=-1, keepdims=True)                        # (Bblk, t, 1) f32

    out = jnp.einsum('bqk,bkd->bqd', p.astype(in_dtype), v3,
                     preferred_element_type=jnp.float32)          # (Bblk, t, c) f32

    # EUP approximate reciprocal (free slot) + one Newton step to restore ~f32 accuracy.
    inv = pl.reciprocal(l, approx=True)
    inv = inv * (2.0 - l * inv)
    o_ref[...] = (out * inv).astype(o_ref.dtype)


def pack_qkv_params(wq, bq, wk, bk, wv, bv):
    """Build kernel-ready stacked params ONCE, outside the jitted call.

    Weights are (in, out)-layout (c, c); the 1/sqrt(c) attention scale is folded into
    the query projection here so the kernel never touches the (t, t) score scale.
    """
    c = wq.shape[0]
    scale = 1.0 / math.sqrt(c)
    w_qkv = jnp.stack([wq * scale, wk, wv])                       # (3, c, c)
    b_qkv = jnp.stack([bq * scale, bk, bv]).reshape(3, 1, c)      # (3, 1, c)
    return w_qkv, b_qkv


@jax.jit
def cdim_self_attention(x, w_qkv, b_qkv):
    """x: (b, t, c); w_qkv: (3, c, c) (in,out layout, q pre-scaled); b_qkv: (3, 1, c)."""
    b, t, c = x.shape

    # Pack enough batch elements per grid step that the QKV matmul presents >=256 rows
    # to the MXU; bblk must divide b so every tile is full.
    bblk = min(b, max(1, pl.cdiv(256, t)))
    while b % bblk:
        bblk -= 1
    grid = (b // bblk,)

    itemsize = jnp.dtype(x.dtype).itemsize
    flops = b * (2 * t * c * 3 * c        # QKV projection
                 + 2 * t * t * c          # scores
                 + 2 * t * t * c)         # attn @ v
    bytes_accessed = (x.size + w_qkv.size + b_qkv.size + b * t * c) * itemsize
    cost = pl.CostEstimate(flops=flops,
                           transcendentals=b * t * t,             # exp in softmax
                           bytes_accessed=bytes_accessed)

    # Per-step VMEM: double-buffered x/out tiles + double-buffered resident weights
    # + f32 intermediates (qkv, scores, p, out). Always request it explicitly (v5e's
    # default scoped limit is only 16 MiB) and cap at ~80% of this generation's
    # physical VMEM (v5e/v6e: 128 MiB, v7x: 64 MiB per TC).
    per_step = (4 * bblk * t * c * itemsize
                + 2 * (3 * c * c + 3 * c) * itemsize
                + (5 * bblk * t * c + 2 * bblk * t * t) * 4)
    try:
        physical_vmem = int(pltpu.get_tpu_info().vmem_capacity_bytes)
    except Exception:  # conservative fallback = smallest current generation (v7x per TC)
        physical_vmem = 64 * 1024 * 1024
    vmem_limit = int(min(max(1.25 * per_step, 16 * 1024 * 1024), 0.8 * physical_vmem))

    return pl.pallas_call(
        _attn_kernel,
        out_shape=jax.ShapeDtypeStruct((b, t, c), x.dtype),
        grid_spec=pltpu.PrefetchScalarGridSpec(
            num_scalar_prefetch=0,
            grid=grid,
            in_specs=[
                pl.BlockSpec((bblk, t, c), lambda i: (i, 0, 0)),   # x tile
                pl.BlockSpec((3, c, c), lambda i: (0, 0, 0)),      # stacked weights (resident)
                pl.BlockSpec((3, 1, c), lambda i: (0, 0, 0)),      # stacked biases (resident)
            ],
            out_specs=pl.BlockSpec((bblk, t, c), lambda i: (i, 0, 0)),
        ),
        compiler_params=pltpu.CompilerParams(
            dimension_semantics=("parallel",),   # batch tiles shard across v7x's 2 TCs
            vmem_limit_bytes=vmem_limit,
        ),
        cost_estimate=cost,
    )(x, w_qkv, b_qkv)


def reference_attention(x, wq, bq, wk, bk, wv, bv):
    c = x.shape[-1]
    q = x @ wq + bq
    k = x @ wk + bk
    v = x @ wv + bv
    s = jnp.einsum('bqd,bkd->bqk', q, k) / math.sqrt(c)
    p = jax.nn.softmax(s, axis=-1)
    return jnp.einsum('bqk,bkd->bqd', p, v)


if __name__ == "__main__":
    # Small shapes consistent with the module's forward: x is (batch, seq, c_dim).
    batch, seq, c_dim = 2, 8, 16

    key = jax.random.PRNGKey(0)
    kx, kwq, kbq, kwk, kbk, kwv, kbv = jax.random.split(key, 7)

    x = jax.random.normal(kx, (batch, seq, c_dim), dtype=jnp.float32)

    # Deterministic parameter init (weights stored as (in, out) for x @ W).
    bound = 1.0 / math.sqrt(c_dim)
    wq = jax.random.uniform(kwq, (c_dim, c_dim), jnp.float32, -bound, bound)
    bq = jax.random.uniform(kbq, (c_dim,), jnp.float32, -bound, bound)
    wk = jax.random.uniform(kwk, (c_dim, c_dim), jnp.float32, -bound, bound)
    bk = jax.random.uniform(kbk, (c_dim,), jnp.float32, -bound, bound)
    wv = jax.random.uniform(kwv, (c_dim, c_dim), jnp.float32, -bound, bound)
    bv = jax.random.uniform(kbv, (c_dim,), jnp.float32, -bound, bound)

    # Pack (and pre-scale) kernel params once, outside the jitted call.
    w_qkv, b_qkv = pack_qkv_params(wq, bq, wk, bk, wv, bv)

    out = cdim_self_attention(x, w_qkv, b_qkv)
    out = jax.block_until_ready(out)

    ref = reference_attention(x, wq, bq, wk, bk, wv, bv)
    assert out.shape == (batch, seq, c_dim)
    assert jnp.allclose(out, ref, atol=1e-4, rtol=1e-3), "mismatch vs reference"

    print("KERNEL_OK")
</pallas_src>

<mosaic_0001>
module attributes {stable_mosaic.version = 11 : i64} {
  func.func @_attn_kernel(%arg0: i32, %arg1: memref<2x8x16xf32, #tpu.memory_space<vmem>>, %arg2: memref<3x16x16xf32, #tpu.memory_space<vmem>>, %arg3: memref<3x1x16xf32, #tpu.memory_space<vmem>>, %arg4: memref<2x8x16xf32, #tpu.memory_space<vmem>>) attributes {dimension_semantics = [#tpu.dimension_semantics<parallel>], iteration_bounds = array<i64: 1>, scalar_prefetch = 0 : i64, scratch_operands = 0 : i64, tpu.core_type = #tpu.core_type<tc>, window_params = [{transform_indices = @transform_0, window_bounds = array<i64: 2, 8, 16>}, {pipeline_mode = #tpu.pipeline_mode<synchronous>, transform_indices = @transform_1, window_bounds = array<i64: 3, 16, 16>}, {pipeline_mode = #tpu.pipeline_mode<synchronous>, transform_indices = @transform_2, window_bounds = array<i64: 3, 1, 16>}, {transform_indices = @transform_3, window_bounds = array<i64: 2, 8, 16>}]} {
    %c0 = arith.constant 0 : index
    %c0_0 = arith.constant 0 : index
    %c0_1 = arith.constant 0 : index
    %0 = vector.load %arg1[%c0, %c0_0, %c0_1] : memref<2x8x16xf32, #tpu.memory_space<vmem>>, vector<2x8x16xf32>
    %1 = vector.shape_cast %0 : vector<2x8x16xf32> to vector<16x16xf32>
    %c0_2 = arith.constant 0 : index
    %c0_3 = arith.constant 0 : index
    %c0_4 = arith.constant 0 : index
    %2 = vector.load %arg2[%c0_2, %c0_3, %c0_4] : memref<3x16x16xf32, #tpu.memory_space<vmem>>, vector<1x16x16xf32>
    %3 = vector.shape_cast %2 : vector<1x16x16xf32> to vector<16x16xf32>
    %cst = arith.constant dense<0.000000e+00> : vector<16x16xf32>
    %4 = tpu.matmul %1, %3, %cst {dimension_numbers = #tpu.dot_dimension_numbers<[1], [0], [0], [1], [0, 0, 1, 1], [], []>} : vector<16x16xf32>, vector<16x16xf32>, vector<16x16xf32> -> vector<16x16xf32>
    %c0_5 = arith.constant 0 : index
    %c0_6 = arith.constant 0 : index
    %c0_7 = arith.constant 0 : index
    %5 = vector.load %arg3[%c0_5, %c0_6, %c0_7] : memref<3x1x16xf32, #tpu.memory_space<vmem>>, vector<1x1x16xf32>
    %6 = vector.shape_cast %5 : vector<1x1x16xf32> to vector<1x16xf32>
    %7 = vector.broadcast %6 : vector<1x16xf32> to vector<16x16xf32>
    %8 = arith.addf %4, %7 : vector<16x16xf32>
    %c1 = arith.constant 1 : index
    %c0_8 = arith.constant 0 : index
    %c0_9 = arith.constant 0 : index
    %9 = vector.load %arg2[%c1, %c0_8, %c0_9] : memref<3x16x16xf32, #tpu.memory_space<vmem>>, vector<1x16x16xf32>
    %10 = vector.shape_cast %9 : vector<1x16x16xf32> to vector<16x16xf32>
    %cst_10 = arith.constant dense<0.000000e+00> : vector<16x16xf32>
    %11 = tpu.matmul %1, %10, %cst_10 {dimension_numbers = #tpu.dot_dimension_numbers<[1], [0], [0], [1], [0, 0, 1, 1], [], []>} : vector<16x16xf32>, vector<16x16xf32>, vector<16x16xf32> -> vector<16x16xf32>
    %c1_11 = arith.constant 1 : index
    %c0_12 = arith.constant 0 : index
    %c0_13 = arith.constant 0 : index
    %12 = vector.load %arg3[%c1_11, %c0_12, %c0_13] : memref<3x1x16xf32, #tpu.memory_space<vmem>>, vector<1x1x16xf32>
    %13 = vector.shape_cast %12 : vector<1x1x16xf32> to vector<1x16xf32>
    %14 = vector.broadcast %13 : vector<1x16xf32> to vector<16x16xf32>
    %15 = arith.addf %11, %14 : vector<16x16xf32>
    %c2 = arith.constant 2 : index
    %c0_14 = arith.constant 0 : index
    %c0_15 = arith.constant 0 : index
    %16 = vector.load %arg2[%c2, %c0_14, %c0_15] : memref<3x16x16xf32, #tpu.memory_space<vmem>>, vector<1x16x16xf32>
    %17 = vector.shape_cast %16 : vector<1x16x16xf32> to vector<16x16xf32>
    %cst_16 = arith.constant dense<0.000000e+00> : vector<16x16xf32>
    %18 = tpu.matmul %1, %17, %cst_16 {dimension_numbers = #tpu.dot_dimension_numbers<[1], [0], [0], [1], [0, 0, 1, 1], [], []>} : vector<16x16xf32>, vector<16x16xf32>, vector<16x16xf32> -> vector<16x16xf32>
    %c2_17 = arith.constant 2 : index
    %c0_18 = arith.constant 0 : index
    %c0_19 = arith.constant 0 : index
    %19 = vector.load %arg3[%c2_17, %c0_18, %c0_19] : memref<3x1x16xf32, #tpu.memory_space<vmem>>, vector<1x1x16xf32>
    %20 = vector.shape_cast %19 : vector<1x1x16xf32> to vector<1x16xf32>
    %21 = vector.broadcast %20 : vector<1x16xf32> to vector<16x16xf32>
    %22 = arith.addf %18, %21 : vector<16x16xf32>
    %23 = vector.shape_cast %8 : vector<16x16xf32> to vector<2x8x16xf32>
    %24 = vector.shape_cast %15 : vector<16x16xf32> to vector<2x8x16xf32>
    %25 = vector.shape_cast %22 : vector<16x16xf32> to vector<2x8x16xf32>
    "tpu.trace_start"() <{level = 10 : i32, message = "bqd,bkd->bqk"}> : () -> ()
    %cst_20 = arith.constant dense<0.000000e+00> : vector<2x8x8xf32>
    %26 = tpu.matmul %23, %24, %cst_20 {dimension_numbers = #tpu.dot_dimension_numbers<[2], [2], [1], [1], [0, 0, 0, 1, 1, 1], [0], [0]>} : vector<2x8x16xf32>, vector<2x8x16xf32>, vector<2x8x8xf32> -> vector<2x8x8xf32>
    "tpu.trace_stop"() : () -> ()
    %cst_21 = arith.constant dense<0xFF800000> : vector<2x8xf32>
    %27 = vector.multi_reduction <maximumf>, %26, %cst_21 [2] : vector<2x8x8xf32> to vector<2x8xf32>
    %28 = vector.shape_cast %27 : vector<2x8xf32> to vector<2x8x1xf32>
    %29 = vector.broadcast %28 : vector<2x8x1xf32> to vector<2x8x8xf32>
    %30 = arith.subf %26, %29 : vector<2x8x8xf32>
    %31 = math.exp %30 : vector<2x8x8xf32>
    %cst_22 = arith.constant dense<0.000000e+00> : vector<2x8xf32>
    %32 = vector.multi_reduction <add>, %31, %cst_22 [2] : vector<2x8x8xf32> to vector<2x8xf32>
    %33 = vector.shape_cast %32 : vector<2x8xf32> to vector<2x8x1xf32>
    "tpu.trace_start"() <{level = 10 : i32, message = "bqk,bkd->bqd"}> : () -> ()
    %cst_23 = arith.constant dense<0.000000e+00> : vector<2x8x16xf32>
    %34 = tpu.matmul %31, %25, %cst_23 {dimension_numbers = #tpu.dot_dimension_numbers<[2], [1], [1], [2], [0, 0, 0, 1, 1, 2], [0], [0]>} : vector<2x8x8xf32>, vector<2x8x16xf32>, vector<2x8x16xf32> -> vector<2x8x16xf32>
    "tpu.trace_stop"() : () -> ()
    %35 = tpu.reciprocal %33 {approx = true} : vector<2x8x1xf32> -> vector<2x8x1xf32>
    %36 = arith.mulf %33, %35 : vector<2x8x1xf32>
    %cst_24 = arith.constant 2.000000e+00 : f32
    %37 = vector.broadcast %cst_24 : f32 to vector<2x8x1xf32>
    %38 = arith.subf %37, %36 : vector<2x8x1xf32>
    %39 = arith.mulf %35, %38 : vector<2x8x1xf32>
    %40 = vector.broadcast %39 : vector<2x8x1xf32> to vector<2x8x16xf32>
    %41 = arith.mulf %34, %40 : vector<2x8x16xf32>
    %c0_25 = arith.constant 0 : index
    %c0_26 = arith.constant 0 : index
    %c0_27 = arith.constant 0 : index
    %42 = vector.load %arg4[%c0_25, %c0_26, %c0_27] : memref<2x8x16xf32, #tpu.memory_space<vmem>>, vector<2x8x16xf32>
    tpu.vector_store %arg4[%c0_25, %c0_26, %c0_27], %41 {strides = array<i32>} : memref<2x8x16xf32, #tpu.memory_space<vmem>>, vector<2x8x16xf32>,
    return
  }
  func.func @transform_0(%arg0: i32) -> (i32, i32, i32) {
    %c0_i32 = arith.constant 0 : i32
    %c0_i32_0 = arith.constant 0 : i32
    %c0_i32_1 = arith.constant 0 : i32
    return %arg0, %c0_i32, %c0_i32_0 : i32, i32, i32
  }
  func.func @transform_1(%arg0: i32) -> (i32, i32, i32) {
    %c0_i32 = arith.constant 0 : i32
    %c0_i32_0 = arith.constant 0 : i32
    %c0_i32_1 = arith.constant 0 : i32
    %c0_i32_2 = arith.constant 0 : i32
    return %c0_i32, %c0_i32_0, %c0_i32_1 : i32, i32, i32
  }
  func.func @transform_2(%arg0: i32) -> (i32, i32, i32) {
    %c0_i32 = arith.constant 0 : i32
    %c0_i32_0 = arith.constant 0 : i32
    %c0_i32_1 = arith.constant 0 : i32
    %c0_i32_2 = arith.constant 0 : i32
    return %c0_i32, %c0_i32_0, %c0_i32_1 : i32, i32, i32
  }
  func.func @transform_3(%arg0: i32) -> (i32, i32, i32) {
    %c0_i32 = arith.constant 0 : i32
    %c0_i32_0 = arith.constant 0 : i32
    %c0_i32_1 = arith.constant 0 : i32
    return %arg0, %c0_i32, %c0_i32_0 : i32, i32, i32
  }
}

</mosaic_0001>

<llo_original>
// kernel: cdim_self_attention.1
$region0: #{cdim_self_attention.1}
  #allocation0 [shape = 'u32[]', space=smem, size = 0x4, offset = 0x4, fixed_abs, tag = 'smem constant byte address 0x4 - core index']
  #allocation1 [shape = 'u32[144,128]{1,0:T(1,128)}', space=vmem, size = 0x12000, scoped, tag = 'internal scratch']
  %s0 = inlined_call_operand.hbm [shape: f32[2,8,16], index: 0, kind: input, shape index: {}]
  %s1 = inlined_call_operand.hbm [shape: f32[3,16,16], index: 1, kind: input, shape index: {}]
  %s2 = inlined_call_operand.vmem [shape: f32[3,1,16], index: 2, kind: input, shape index: {}]
  %s3 = inlined_call_operand.hbm [shape: f32[2,8,16], index: 3, kind: output, shape index: {}]
  %s4 = sld [smem:[#allocation0]]
  $region30: #{cdim_self_attention.1} parent=0
    _
  %s6 = ssub.s32 1, %s4
  %s7 = scalar_select 0, %s6, %s4
  $region1: #{cdim_self_attention.1} parent=0
    #allocation2 [shape = 'u8[8192]{0}', space=vmem, size = 0x2000, scoped, tag = 'input window, operand 0, single buffered']
    #allocation3 [shape = 's32[1]{0}', space=sflag, size = 0x4, scoped, tag = 'scoped memory for cdim_self_attention.1']
    #allocation4 [shape = 's32[1]{0}', space=sflag, size = 0x4, scoped, tag = 'scoped memory for cdim_self_attention.1']
    #allocation5 [shape = 'u8[24576]{0}', space=vmem, size = 0x6000, scoped, tag = 'input window, operand 1, single buffered']
    #allocation6 [shape = 's32[1]{0}', space=sflag, size = 0x4, scoped, tag = 'scoped memory for cdim_self_attention.1']
    #allocation7 [shape = 'u8[8192]{0}', space=vmem, size = 0x2000, scoped, tag = 'output window, operand 0, single buffered']
    %8 = vsyncpa [#allocation3], 0
    %9 = vsyncpa [#allocation6], 0
    %10 = vsyncpa [#allocation4], 0
    // Predicated region
    $region2: #{cdim_self_attention.1} parent=1 // pred_check
      _
    $region3: #{cdim_self_attention.1} parent=1 // pred_check_branch
      %12 = sbr.rel (0) target = $region5
    $region4: #{cdim_self_attention.1} parent=1 // pred_region
      %s14 = ssub.s32 256, 256
      %15 = vsyncadd [#allocation3], %s14
      %s16 = sshll.u32 [#allocation2], 4
      %s17 = int_to_ptr.vmem [resolvable:$true] %s16
      %22 = dma.hbm_to_vmem [thread:$0]  %s0, 256, %s17, [#allocation3], 128, 128, 8
    $region5: #{cdim_self_attention.1} parent=1 // pred_fallthru
      _
    // Predicated region
    $region6: #{cdim_self_attention.1} parent=1 // pred_check
      _
    $region7: #{cdim_self_attention.1} parent=1 // pred_check_branch
      %24 = sbr.rel (0) target = $region9
    $region8: #{cdim_self_attention.1} parent=1 // pred_region
      %s26 = ssub.s32 768, 768
      %27 = vsyncadd [#allocation6], %s26
      %s28 = sshll.u32 [#allocation5], 4
      %s29 = int_to_ptr.vmem [resolvable:$true] %s28
      %34 = dma.hbm_to_vmem [thread:$0]  %s1, 768, %s29, [#allocation6], 128, 128, 8
    $region9: #{cdim_self_attention.1} parent=1 // pred_fallthru
      _
    // Predicated region
    $region10: #{cdim_self_attention.1} parent=1 // pred_check
      _
    $region11: #{cdim_self_attention.1} parent=1 // pred_check_branch
      %36 = sbr.rel (0) target = $region13
    $region12: #{cdim_self_attention.1} parent=1 // pred_region
      _
    $region13: #{cdim_self_attention.1} parent=1 // pred_fallthru
      _
    // Predicated region
    $region14: #{cdim_self_attention.1} parent=1 // pred_check
      _
    $region15: #{cdim_self_attention.1} parent=1 // pred_check_branch
      %38 = sbr.rel (0) target = $region17
    $region16: #{cdim_self_attention.1} parent=1 // pred_region
      %39 = dma.done [#allocation3], 256
    $region17: #{cdim_self_attention.1} parent=1 // pred_fallthru
      _
    // Predicated region
    $region18: #{cdim_self_attention.1} parent=1 // pred_check
      _
    $region19: #{cdim_self_attention.1} parent=1 // pred_check_branch
      %41 = sbr.rel (0) target = $region21
    $region20: #{cdim_self_attention.1} parent=1 // pred_region
      %42 = dma.done [#allocation6], 768
    $region21: #{cdim_self_attention.1} parent=1 // pred_fallthru
      _
    %v43 = vld [vmem:[#allocation2] sm:$0xff]
    %v44 = vld [vmem:[#allocation2 + $0x8] sm:$0xff]
    %v45 = vld [vmem:[#allocation5] sm:$0xff]
    %v46 = vld [vmem:[#allocation5 + $0x8] sm:$0xff]
    %v47 = vld [vmem:[%s2] sm:$0x1]
    %v49 = vlaneseq
    %v50 = vshrl.u32 %v49, 7
    %v51 = vsub.s32 0, %v50
    %v52 = vrot.slane %v47, %v51
    %vm54 = vcmask 130048
    %v56 = vsel %vm54, %v43, 0
    %v59 = vsel %vm54, %v44, 0
    %61 = vmatprep.subr.mxu0 0.0
    %62 = vmatpush1.msra.mxu0 0.0
    %63 = vmatprep.subr.mxu0 0.0
    %64 = vmatpush1.msra.mxu0 0.0
    %65 = vmatprep.subr.mxu0 0.0
    %66 = vmatpush1.msra.mxu0 0.0
    %67 = vmatprep.subr.mxu0 0.0
    %68 = vmatpush1.msra.mxu0 0.0
    %69 = vmatprep.subr.mxu0 0.0
    %70 = vmatpush1.msra.mxu0 0.0
    %71 = vmatprep.subr.mxu0 0.0
    %72 = vmatpush1.msra.mxu0 0.0
    %73 = vmatprep.subr.mxu0 0.0
    %74 = vmatpush1.msra.mxu0 0.0
    %75 = vmatprep.subr.mxu0 0.0
    %76 = vmatpush1.msra.mxu0 0.0
    %77 = vmatprep.subr.mxu0 0.0
    %78 = vmatpush1.msra.mxu0 0.0
    %79 = vmatprep.subr.mxu0 0.0
    %80 = vmatpush1.msra.mxu0 0.0
    %81 = vmatprep.subr.mxu0 0.0
    %82 = vmatpush1.msra.mxu0 0.0
    %83 = vmatprep.subr.mxu0 0.0
    %84 = vmatpush1.msra.mxu0 0.0
    %85 = vmatprep.subr.mxu0 0.0
    %86 = vmatpush1.msra.mxu0 0.0
    %87 = vmatprep.subr.mxu0 0.0
    %88 = vmatpush1.msra.mxu0 0.0
    %89 = vmatprep.subr.mxu0 0.0
    %90 = vmatpush1.msra.mxu0 %v46
    %91 = vmatprep.subr.mxu0 0.0
    %92 = vmatpush1.msra.mxu0 %v45
    %93 = vmatprep.subr.mxu0 0.0
    %94 = vmatpush2.msra.mxu0 0.0
    %95 = vmatprep.subr.mxu0 0.0
    %96 = vmatpush2.msra.mxu0 0.0
    %97 = vmatprep.subr.mxu0 0.0
    %98 = vmatpush2.msra.mxu0 0.0
    %99 = vmatprep.subr.mxu0 0.0
    %100 = vmatpush2.msra.mxu0 0.0
    %101 = vmatprep.subr.mxu0 0.0
    %102 = vmatpush2.msra.mxu0 0.0
    %103 = vmatprep.subr.mxu0 0.0
    %104 = vmatpush2.msra.mxu0 0.0
    %105 = vmatprep.subr.mxu0 0.0
    %106 = vmatpush2.msra.mxu0 0.0
    %107 = vmatprep.subr.mxu0 0.0
    %108 = vmatpush2.msra.mxu0 0.0
    %109 = vmatprep.subr.mxu0 0.0
    %110 = vmatpush2.msra.mxu0 0.0
    %111 = vmatprep.subr.mxu0 0.0
    %112 = vmatpush2.msra.mxu0 0.0
    %113 = vmatprep.subr.mxu0 0.0
    %114 = vmatpush2.msra.mxu0 0.0
    %115 = vmatprep.subr.mxu0 0.0
    %116 = vmatpush2.msra.mxu0 0.0
    %117 = vmatprep.subr.mxu0 0.0
    %118 = vmatpush2.msra.mxu0 0.0
    %119 = vmatprep.subr.mxu0 0.0
    %120 = vmatpush2.msra.mxu0 0.0
    %121 = vmatprep.subr.mxu0 0.0
    %122 = vmatpush2.msra.mxu0 0.0
    %123 = vmatprep.subr.mxu0 0.0
    %124 = vmatpush2.msra.mxu0 0.0
    %125 = vmatprep.mubr.f32.mxu0 0.0
    %126 = vmatmul.mubr.f32.gmra.mxu0 %v56
    %v127 = vpop.f32.mrf.mxu0
    %v128 = vadd.f32 %v52, %v127
    %v129 = vpop.f32.mrf.mxu0
    %130 = vmatprep.mubr.f32.mxu0 0.0
    %131 = vmatmul.mubr.f32.gmra.mxu0 %v59
    %v132 = vpop.f32.mrf.mxu0
    %v133 = vadd.f32 %v52, %v132
    %v134 = vpop.f32.mrf.mxu0
    %135 = vdwg.mxu0
    %s136 = scalar_lea.vmem [#allocation5], 16
    %v137 = vld [vmem:[%s136] sm:$0xff]
    %v138 = vld [vmem:[%s136 + $0x8] sm:$0xff]
    %s139 = scalar_lea.vmem %s2, 1
    %v140 = vld [vmem:[%s139] sm:$0x1]
    %v142 = vlaneseq
    %v143 = vshrl.u32 %v142, 7
    %v144 = vsub.s32 0, %v143
    %v145 = vrot.slane %v140, %v144
    %147 = vmatprep.subr.mxu0 0.0
    %148 = vmatpush1.msra.mxu0 0.0
    %149 = vmatprep.subr.mxu0 0.0
    %150 = vmatpush1.msra.mxu0 0.0
    %151 = vmatprep.subr.mxu0 0.0
    %152 = vmatpush1.msra.mxu0 0.0
    %153 = vmatprep.subr.mxu0 0.0
    %154 = vmatpush1.msra.mxu0 0.0
    %155 = vmatprep.subr.mxu0 0.0
    %156 = vmatpush1.msra.mxu0 0.0
    %157 = vmatprep.subr.mxu0 0.0
    %158 = vmatpush1.msra.mxu0 0.0
    %159 = vmatprep.subr.mxu0 0.0
    %160 = vmatpush1.msra.mxu0 0.0
    %161 = vmatprep.subr.mxu0 0.0
    %162 = vmatpush1.msra.mxu0 0.0
    %163 = vmatprep.subr.mxu0 0.0
    %164 = vmatpush1.msra.mxu0 0.0
    %165 = vmatprep.subr.mxu0 0.0
    %166 = vmatpush1.msra.mxu0 0.0
    %167 = vmatprep.subr.mxu0 0.0
    %168 = vmatpush1.msra.mxu0 0.0
    %169 = vmatprep.subr.mxu0 0.0
    %170 = vmatpush1.msra.mxu0 0.0
    %171 = vmatprep.subr.mxu0 0.0
    %172 = vmatpush1.msra.mxu0 0.0
    %173 = vmatprep.subr.mxu0 0.0
    %174 = vmatpush1.msra.mxu0 0.0
    %175 = vmatprep.subr.mxu0 0.0
    %176 = vmatpush1.msra.mxu0 %v138
    %177 = vmatprep.subr.mxu0 0.0
    %178 = vmatpush1.msra.mxu0 %v137
    %179 = vmatprep.subr.mxu0 0.0
    %180 = vmatpush2.msra.mxu0 0.0
    %181 = vmatprep.subr.mxu0 0.0
    %182 = vmatpush2.msra.mxu0 0.0
    %183 = vmatprep.subr.mxu0 0.0
    %184 = vmatpush2.msra.mxu0 0.0
    %185 = vmatprep.subr.mxu0 0.0
    %186 = vmatpush2.msra.mxu0 0.0
    %187 = vmatprep.subr.mxu0 0.0
    %188 = vmatpush2.msra.mxu0 0.0
    %189 = vmatprep.subr.mxu0 0.0
    %190 = vmatpush2.msra.mxu0 0.0
    %191 = vmatprep.subr.mxu0 0.0
    %192 = vmatpush2.msra.mxu0 0.0
    %193 = vmatprep.subr.mxu0 0.0
    %194 = vmatpush2.msra.mxu0 0.0
    %195 = vmatprep.subr.mxu0 0.0
    %196 = vmatpush2.msra.mxu0 0.0
    %197 = vmatprep.subr.mxu0 0.0
    %198 = vmatpush2.msra.mxu0 0.0
    %199 = vmatprep.subr.mxu0 0.0
    %200 = vmatpush2.msra.mxu0 0.0
    %201 = vmatprep.subr.mxu0 0.0
    %202 = vmatpush2.msra.mxu0 0.0
    %203 = vmatprep.subr.mxu0 0.0
    %204 = vmatpush2.msra.mxu0 0.0
    %205 = vmatprep.subr.mxu0 0.0
    %206 = vmatpush2.msra.mxu0 0.0
    %207 = vmatprep.subr.mxu0 0.0
    %208 = vmatpush2.msra.mxu0 0.0
    %209 = vmatprep.subr.mxu0 0.0
    %210 = vmatpush2.msra.mxu0 0.0
    %211 = vmatprep.mubr.f32.mxu0 0.0
    %212 = vmatmul.mubr.f32.gmra.mxu0 %v56
    %v213 = vpop.f32.mrf.mxu0
    %v214 = vadd.f32 %v145, %v213
    %v215 = vpop.f32.mrf.mxu0
    %216 = vmatprep.mubr.f32.mxu0 0.0
    %217 = vmatmul.mubr.f32.gmra.mxu0 %v59
    %v218 = vpop.f32.mrf.mxu0
    %v219 = vadd.f32 %v145, %v218
    %v220 = vpop.f32.mrf.mxu0
    %221 = vdwg.mxu0
    %s222 = scalar_lea.vmem [#allocation5], 32
    %v223 = vld [vmem:[%s222] sm:$0xff]
    %v224 = vld [vmem:[%s222 + $0x8] sm:$0xff]
    %s225 = scalar_lea.vmem %s2, 2
    %v226 = vld [vmem:[%s225] sm:$0x1]
    %v228 = vlaneseq
    %v229 = vshrl.u32 %v228, 7
    %v230 = vsub.s32 0, %v229
    %v231 = vrot.slane %v226, %v230
    %233 = vmatprep.subr.mxu0 0.0
    %234 = vmatpush1.msra.mxu0 0.0
    %235 = vmatprep.subr.mxu0 0.0
    %236 = vmatpush1.msra.mxu0 0.0
    %237 = vmatprep.subr.mxu0 0.0
    %238 = vmatpush1.msra.mxu0 0.0
    %239 = vmatprep.subr.mxu0 0.0
    %240 = vmatpush1.msra.mxu0 0.0
    %241 = vmatprep.subr.mxu0 0.0
    %242 = vmatpush1.msra.mxu0 0.0
    %243 = vmatprep.subr.mxu0 0.0
    %244 = vmatpush1.msra.mxu0 0.0
    %245 = vmatprep.subr.mxu0 0.0
    %246 = vmatpush1.msra.mxu0 0.0
    %247 = vmatprep.subr.mxu0 0.0
    %248 = vmatpush1.msra.mxu0 0.0
    %249 = vmatprep.subr.mxu0 0.0
    %250 = vmatpush1.msra.mxu0 0.0
    %251 = vmatprep.subr.mxu0 0.0
    %252 = vmatpush1.msra.mxu0 0.0
    %253 = vmatprep.subr.mxu0 0.0
    %254 = vmatpush1.msra.mxu0 0.0
    %255 = vmatprep.subr.mxu0 0.0
    %256 = vmatpush1.msra.mxu0 0.0
    %257 = vmatprep.subr.mxu0 0.0
    %258 = vmatpush1.msra.mxu0 0.0
    %259 = vmatprep.subr.mxu0 0.0
    %260 = vmatpush1.msra.mxu0 0.0
    %261 = vmatprep.subr.mxu0 0.0
    %262 = vmatpush1.msra.mxu0 %v224
    %263 = vmatprep.subr.mxu0 0.0
    %264 = vmatpush1.msra.mxu0 %v223
    %265 = vmatprep.subr.mxu0 0.0
    %266 = vmatpush2.msra.mxu0 0.0
    %267 = vmatprep.subr.mxu0 0.0
    %268 = vmatpush2.msra.mxu0 0.0
    %269 = vmatprep.subr.mxu0 0.0
    %270 = vmatpush2.msra.mxu0 0.0
    %271 = vmatprep.subr.mxu0 0.0
    %272 = vmatpush2.msra.mxu0 0.0
    %273 = vmatprep.subr.mxu0 0.0
    %274 = vmatpush2.msra.mxu0 0.0
    %275 = vmatprep.subr.mxu0 0.0
    %276 = vmatpush2.msra.mxu0 0.0
    %277 = vmatprep.subr.mxu0 0.0
    %278 = vmatpush2.msra.mxu0 0.0
    %279 = vmatprep.subr.mxu0 0.0
    %280 = vmatpush2.msra.mxu0 0.0
    %281 = vmatprep.subr.mxu0 0.0
    %282 = vmatpush2.msra.mxu0 0.0
    %283 = vmatprep.subr.mxu0 0.0
    %284 = vmatpush2.msra.mxu0 0.0
    %285 = vmatprep.subr.mxu0 0.0
    %286 = vmatpush2.msra.mxu0 0.0
    %287 = vmatprep.subr.mxu0 0.0
    %288 = vmatpush2.msra.mxu0 0.0
    %289 = vmatprep.subr.mxu0 0.0
    %290 = vmatpush2.msra.mxu0 0.0
    %291 = vmatprep.subr.mxu0 0.0
    %292 = vmatpush2.msra.mxu0 0.0
    %293 = vmatprep.subr.mxu0 0.0
    %294 = vmatpush2.msra.mxu0 0.0
    %295 = vmatprep.subr.mxu0 0.0
    %296 = vmatpush2.msra.mxu0 0.0
    %297 = vmatprep.mubr.f32.mxu0 0.0
    %298 = vmatmul.mubr.f32.gmra.mxu0 %v56
    %v299 = vpop.f32.mrf.mxu0
    %v300 = vadd.f32 %v231, %v299
    %v301 = vpop.f32.mrf.mxu0
    %302 = vmatprep.mubr.f32.mxu0 0.0
    %303 = vmatmul.mubr.f32.gmra.mxu0 %v59
    %v304 = vpop.f32.mrf.mxu0
    %v305 = vadd.f32 %v231, %v304
    %v306 = vpop.f32.mrf.mxu0
    %307 = vdwg.mxu0
    %v309 = vsel %vm54, %v128, 0
    %v312 = vsel %vm54, %v214, 0
    %314 = vmatprep.subr.mxu0 0.0
    %315 = vmatpush1.xpose.msra.mxu0 0.0
    %316 = vmatprep.subr.mxu0 0.0
    %317 = vmatpush1.xpose.msra.mxu0 0.0
    %318 = vmatprep.subr.mxu0 0.0
    %319 = vmatpush1.xpose.msra.mxu0 0.0
    %320 = vmatprep.subr.mxu0 0.0
    %321 = vmatpush1.xpose.msra.mxu0 0.0
    %322 = vmatprep.subr.mxu0 0.0
    %323 = vmatpush1.xpose.msra.mxu0 0.0
    %324 = vmatprep.subr.mxu0 0.0
    %325 = vmatpush1.xpose.msra.mxu0 0.0
    %326 = vmatprep.subr.mxu0 0.0
    %327 = vmatpush1.xpose.msra.mxu0 0.0
    %328 = vmatprep.subr.mxu0 0.0
    %329 = vmatpush1.xpose.msra.mxu0 0.0
    %330 = vmatprep.subr.mxu0 0.0
    %331 = vmatpush1.xpose.msra.mxu0 0.0
    %332 = vmatprep.subr.mxu0 0.0
    %333 = vmatpush1.xpose.msra.mxu0 0.0
    %334 = vmatprep.subr.mxu0 0.0
    %335 = vmatpush1.xpose.msra.mxu0 0.0
    %336 = vmatprep.subr.mxu0 0.0
    %337 = vmatpush1.xpose.msra.mxu0 0.0
    %338 = vmatprep.subr.mxu0 0.0
    %339 = vmatpush1.xpose.msra.mxu0 0.0
    %340 = vmatprep.subr.mxu0 0.0
    %341 = vmatpush1.xpose.msra.mxu0 0.0
    %342 = vmatprep.subr.mxu0 0.0
    %343 = vmatpush1.xpose.msra.mxu0 0.0
    %344 = vmatprep.subr.mxu0 0.0
    %345 = vmatpush1.xpose.msra.mxu0 %v312
    %346 = vmatprep.subr.mxu0 0.0
    %347 = vmatpush2.xpose.msra.mxu0 0.0
    %348 = vmatprep.subr.mxu0 0.0
    %349 = vmatpush2.xpose.msra.mxu0 0.0
    %350 = vmatprep.subr.mxu0 0.0
    %351 = vmatpush2.xpose.msra.mxu0 0.0
    %352 = vmatprep.subr.mxu0 0.0
    %353 = vmatpush2.xpose.msra.mxu0 0.0
    %354 = vmatprep.subr.mxu0 0.0
    %355 = vmatpush2.xpose.msra.mxu0 0.0
    %356 = vmatprep.subr.mxu0 0.0
    %357 = vmatpush2.xpose.msra.mxu0 0.0
    %358 = vmatprep.subr.mxu0 0.0
    %359 = vmatpush2.xpose.msra.mxu0 0.0
    %360 = vmatprep.subr.mxu0 0.0
    %361 = vmatpush2.xpose.msra.mxu0 0.0
    %362 = vmatprep.subr.mxu0 0.0
    %363 = vmatpush2.xpose.msra.mxu0 0.0
    %364 = vmatprep.subr.mxu0 0.0
    %365 = vmatpush2.xpose.msra.mxu0 0.0
    %366 = vmatprep.subr.mxu0 0.0
    %367 = vmatpush2.xpose.msra.mxu0 0.0
    %368 = vmatprep.subr.mxu0 0.0
    %369 = vmatpush2.xpose.msra.mxu0 0.0
    %370 = vmatprep.subr.mxu0 0.0
    %371 = vmatpush2.xpose.msra.mxu0 0.0
    %372 = vmatprep.subr.mxu0 0.0
    %373 = vmatpush2.xpose.msra.mxu0 0.0
    %374 = vmatprep.subr.mxu0 0.0
    %375 = vmatpush2.xpose.msra.mxu0 0.0
    %376 = vmatprep.subr.mxu0 0.0
    %377 = vmatpush2.xpose.msra.mxu0 0.0
    %378 = vmatprep.mubr.f32.mxu0 0.0
    %379 = vmatmul.mubr.f32.gmra.mxu0 %v309
    %v380 = vpop.f32.mrf.mxu0
    %v381 = vadd.f32 0.0, %v380
    %v382 = vpop.f32.mrf.mxu0
    %383 = vdwg.mxu0
    %v385 = vsel %vm54, %v133, 0
    %v388 = vsel %vm54, %v219, 0
    %390 = vmatprep.subr.mxu0 0.0
    %391 = vmatpush1.xpose.msra.mxu0 0.0
    %392 = vmatprep.subr.mxu0 0.0
    %393 = vmatpush1.xpose.msra.mxu0 0.0
    %394 = vmatprep.subr.mxu0 0.0
    %395 = vmatpush1.xpose.msra.mxu0 0.0
    %396 = vmatprep.subr.mxu0 0.0
    %397 = vmatpush1.xpose.msra.mxu0 0.0
    %398 = vmatprep.subr.mxu0 0.0
    %399 = vmatpush1.xpose.msra.mxu0 0.0
    %400 = vmatprep.subr.mxu0 0.0
    %401 = vmatpush1.xpose.msra.mxu0 0.0
    %402 = vmatprep.subr.mxu0 0.0
    %403 = vmatpush1.xpose.msra.mxu0 0.0
    %404 = vmatprep.subr.mxu0 0.0
    %405 = vmatpush1.xpose.msra.mxu0 0.0
    %406 = vmatprep.subr.mxu0 0.0
    %407 = vmatpush1.xpose.msra.mxu0 0.0
    %408 = vmatprep.subr.mxu0 0.0
    %409 = vmatpush1.xpose.msra.mxu0 0.0
    %410 = vmatprep.subr.mxu0 0.0
    %411 = vmatpush1.xpose.msra.mxu0 0.0
    %412 = vmatprep.subr.mxu0 0.0
    %413 = vmatpush1.xpose.msra.mxu0 0.0
    %414 = vmatprep.subr.mxu0 0.0
    %415 = vmatpush1.xpose.msra.mxu0 0.0
    %416 = vmatprep.subr.mxu0 0.0
    %417 = vmatpush1.xpose.msra.mxu0 0.0
    %418 = vmatprep.subr.mxu0 0.0
    %419 = vmatpush1.xpose.msra.mxu0 0.0
    %420 = vmatprep.subr.mxu0 0.0
    %421 = vmatpush1.xpose.msra.mxu0 %v388
    %422 = vmatprep.subr.mxu0 0.0
    %423 = vmatpush2.xpose.msra.mxu0 0.0
    %424 = vmatprep.subr.mxu0 0.0
    %425 = vmatpush2.xpose.msra.mxu0 0.0
    %426 = vmatprep.subr.mxu0 0.0
    %427 = vmatpush2.xpose.msra.mxu0 0.0
    %428 = vmatprep.subr.mxu0 0.0
    %429 = vmatpush2.xpose.msra.mxu0 0.0
    %430 = vmatprep.subr.mxu0 0.0
    %431 = vmatpush2.xpose.msra.mxu0 0.0
    %432 = vmatprep.subr.mxu0 0.0
    %433 = vmatpush2.xpose.msra.mxu0 0.0
    %434 = vmatprep.subr.mxu0 0.0
    %435 = vmatpush2.xpose.msra.mxu0 0.0
    %436 = vmatprep.subr.mxu0 0.0
    %437 = vmatpush2.xpose.msra.mxu0 0.0
    %438 = vmatprep.subr.mxu0 0.0
    %439 = vmatpush2.xpose.msra.mxu0 0.0
    %440 = vmatprep.subr.mxu0 0.0
    %441 = vmatpush2.xpose.msra.mxu0 0.0
    %442 = vmatprep.subr.mxu0 0.0
    %443 = vmatpush2.xpose.msra.mxu0 0.0
    %444 = vmatprep.subr.mxu0 0.0
    %445 = vmatpush2.xpose.msra.mxu0 0.0
    %446 = vmatprep.subr.mxu0 0.0
    %447 = vmatpush2.xpose.msra.mxu0 0.0
    %448 = vmatprep.subr.mxu0 0.0
    %449 = vmatpush2.xpose.msra.mxu0 0.0
    %450 = vmatprep.subr.mxu0 0.0
    %451 = vmatpush2.xpose.msra.mxu0 0.0
    %452 = vmatprep.subr.mxu0 0.0
    %453 = vmatpush2.xpose.msra.mxu0 0.0
    %454 = vmatprep.mubr.f32.mxu0 0.0
    %455 = vmatmul.mubr.f32.gmra.mxu0 %v385
    %v456 = vpop.f32.mrf.mxu0
    %v457 = vadd.f32 0.0, %v456
    %v458 = vpop.f32.mrf.mxu0
    %459 = vdwg.mxu0
    %vm460 = vcmask 64512
    %v461 = vsel %vm460, %v381, -inf
    %462 = vmax.xlane.f32.xlu0 %v461
    %v463 = vpop.xlane.xlu0 %462
    %v464 = vsel %vm460, %v457, -inf
    %465 = vmax.xlane.f32.xlu0 %v464
    %v466 = vpop.xlane.xlu0 %465
    %v467 = vsub.f32 %v381, %v463
    %v468 = vsub.f32 %v457, %v466
    %v469 = vmul.f32 %v467, 1.442695
    %v470 = vpow.pop %v469
    %v471 = vmul.f32 %v468, 1.442695
    %v472 = vpow.pop %v471
    %v473 = vsel %vm460, %v470, 0.0
    %474 = vadd.xlane.f32.xlu0 %v473
    %v475 = vpop.xlane.xlu0 %474
    %v476 = vsel %vm460, %v472, 0.0
    %477 = vadd.xlane.f32.xlu0 %v476
    %v478 = vpop.xlane.xlu0 %477
    %v480 = vsel %vm460, %v470, 0
    %482 = vmatprep.subr.mxu0 0.0
    %483 = vmatpush1.msra.mxu0 0.0
    %484 = vmatprep.subr.mxu0 0.0
    %485 = vmatpush1.msra.mxu0 0.0
    %486 = vmatprep.subr.mxu0 0.0
    %487 = vmatpush1.msra.mxu0 0.0
    %488 = vmatprep.subr.mxu0 0.0
    %489 = vmatpush1.msra.mxu0 0.0
    %490 = vmatprep.subr.mxu0 0.0
    %491 = vmatpush1.msra.mxu0 0.0
    %492 = vmatprep.subr.mxu0 0.0
    %493 = vmatpush1.msra.mxu0 0.0
    %494 = vmatprep.subr.mxu0 0.0
    %495 = vmatpush1.msra.mxu0 0.0
    %496 = vmatprep.subr.mxu0 0.0
    %497 = vmatpush1.msra.mxu0 0.0
    %498 = vmatprep.subr.mxu0 0.0
    %499 = vmatpush1.msra.mxu0 0.0
    %500 = vmatprep.subr.mxu0 0.0
    %501 = vmatpush1.msra.mxu0 0.0
    %502 = vmatprep.subr.mxu0 0.0
    %503 = vmatpush1.msra.mxu0 0.0
    %504 = vmatprep.subr.mxu0 0.0
    %505 = vmatpush1.msra.mxu0 0.0
    %506 = vmatprep.subr.mxu0 0.0
    %507 = vmatpush1.msra.mxu0 0.0
    %508 = vmatprep.subr.mxu0 0.0
    %509 = vmatpush1.msra.mxu0 0.0
    %510 = vmatprep.subr.mxu0 0.0
    %511 = vmatpush1.msra.mxu0 0.0
    %512 = vmatprep.subr.mxu0 0.0
    %513 = vmatpush1.msra.mxu0 %v300
    %514 = vmatprep.subr.mxu0 0.0
    %515 = vmatpush2.msra.mxu0 0.0
    %516 = vmatprep.subr.mxu0 0.0
    %517 = vmatpush2.msra.mxu0 0.0
    %518 = vmatprep.subr.mxu0 0.0
    %519 = vmatpush2.msra.mxu0 0.0
    %520 = vmatprep.subr.mxu0 0.0
    %521 = vmatpush2.msra.mxu0 0.0
    %522 = vmatprep.subr.mxu0 0.0
    %523 = vmatpush2.msra.mxu0 0.0
    %524 = vmatprep.subr.mxu0 0.0
    %525 = vmatpush2.msra.mxu0 0.0
    %526 = vmatprep.subr.mxu0 0.0
    %527 = vmatpush2.msra.mxu0 0.0
    %528 = vmatprep.subr.mxu0 0.0
    %529 = vmatpush2.msra.mxu0 0.0
    %530 = vmatprep.subr.mxu0 0.0
    %531 = vmatpush2.msra.mxu0 0.0
    %532 = vmatprep.subr.mxu0 0.0
    %533 = vmatpush2.msra.mxu0 0.0
    %534 = vmatprep.subr.mxu0 0.0
    %535 = vmatpush2.msra.mxu0 0.0
    %536 = vmatprep.subr.mxu0 0.0
    %537 = vmatpush2.msra.mxu0 0.0
    %538 = vmatprep.subr.mxu0 0.0
    %539 = vmatpush2.msra.mxu0 0.0
    %540 = vmatprep.subr.mxu0 0.0
    %541 = vmatpush2.msra.mxu0 0.0
    %542 = vmatprep.subr.mxu0 0.0
    %543 = vmatpush2.msra.mxu0 0.0
    %544 = vmatprep.subr.mxu0 0.0
    %545 = vmatpush2.msra.mxu0 0.0
    %546 = vmatprep.mubr.f32.mxu0 0.0
    %547 = vmatmul.mubr.f32.gmra.mxu0 %v480
    %v548 = vpop.f32.mrf.mxu0
    %v549 = vadd.f32 0.0, %v548
    %v550 = vpop.f32.mrf.mxu0
    %551 = vdwg.mxu0
    %v553 = vsel %vm460, %v472, 0
    %555 = vmatprep.subr.mxu0 0.0
    %556 = vmatpush1.msra.mxu0 0.0
    %557 = vmatprep.subr.mxu0 0.0
    %558 = vmatpush1.msra.mxu0 0.0
    %559 = vmatprep.subr.mxu0 0.0
    %560 = vmatpush1.msra.mxu0 0.0
    %561 = vmatprep.subr.mxu0 0.0
    %562 = vmatpush1.msra.mxu0 0.0
    %563 = vmatprep.subr.mxu0 0.0
    %564 = vmatpush1.msra.mxu0 0.0
    %565 = vmatprep.subr.mxu0 0.0
    %566 = vmatpush1.msra.mxu0 0.0
    %567 = vmatprep.subr.mxu0 0.0
    %568 = vmatpush1.msra.mxu0 0.0
    %569 = vmatprep.subr.mxu0 0.0
    %570 = vmatpush1.msra.mxu0 0.0
    %571 = vmatprep.subr.mxu0 0.0
    %572 = vmatpush1.msra.mxu0 0.0
    %573 = vmatprep.subr.mxu0 0.0
    %574 = vmatpush1.msra.mxu0 0.0
    %575 = vmatprep.subr.mxu0 0.0
    %576 = vmatpush1.msra.mxu0 0.0
    %577 = vmatprep.subr.mxu0 0.0
    %578 = vmatpush1.msra.mxu0 0.0
    %579 = vmatprep.subr.mxu0 0.0
    %580 = vmatpush1.msra.mxu0 0.0
    %581 = vmatprep.subr.mxu0 0.0
    %582 = vmatpush1.msra.mxu0 0.0
    %583 = vmatprep.subr.mxu0 0.0
    %584 = vmatpush1.msra.mxu0 0.0
    %585 = vmatprep.subr.mxu0 0.0
    %586 = vmatpush1.msra.mxu0 %v305
    %587 = vmatprep.subr.mxu0 0.0
    %588 = vmatpush2.msra.mxu0 0.0
    %589 = vmatprep.subr.mxu0 0.0
    %590 = vmatpush2.msra.mxu0 0.0
    %591 = vmatprep.subr.mxu0 0.0
    %592 = vmatpush2.msra.mxu0 0.0
    %593 = vmatprep.subr.mxu0 0.0
    %594 = vmatpush2.msra.mxu0 0.0
    %595 = vmatprep.subr.mxu0 0.0
    %596 = vmatpush2.msra.mxu0 0.0
    %597 = vmatprep.subr.mxu0 0.0
    %598 = vmatpush2.msra.mxu0 0.0
    %599 = vmatprep.subr.mxu0 0.0
    %600 = vmatpush2.msra.mxu0 0.0
    %601 = vmatprep.subr.mxu0 0.0
    %602 = vmatpush2.msra.mxu0 0.0
    %603 = vmatprep.subr.mxu0 0.0
    %604 = vmatpush2.msra.mxu0 0.0
    %605 = vmatprep.subr.mxu0 0.0
    %606 = vmatpush2.msra.mxu0 0.0
    %607 = vmatprep.subr.mxu0 0.0
    %608 = vmatpush2.msra.mxu0 0.0
    %609 = vmatprep.subr.mxu0 0.0
    %610 = vmatpush2.msra.mxu0 0.0
    %611 = vmatprep.subr.mxu0 0.0
    %612 = vmatpush2.msra.mxu0 0.0
    %613 = vmatprep.subr.mxu0 0.0
    %614 = vmatpush2.msra.mxu0 0.0
    %615 = vmatprep.subr.mxu0 0.0
    %616 = vmatpush2.msra.mxu0 0.0
    %617 = vmatprep.subr.mxu0 0.0
    %618 = vmatpush2.msra.mxu0 0.0
    %619 = vmatprep.mubr.f32.mxu0 0.0
    %620 = vmatmul.mubr.f32.gmra.mxu0 %v553
    %v621 = vpop.f32.mrf.mxu0
    %v622 = vadd.f32 0.0, %v621
    %v623 = vpop.f32.mrf.mxu0
    %624 = vdwg.mxu0
    %v625 = vrcp.pop %v475
    %v626 = vrcp.pop %v478
    %v627 = vmul.f32 %v475, %v625
    %v628 = vmul.f32 %v478, %v626
    %v629 = vsub.f32 2.0, %v627
    %v630 = vsub.f32 2.0, %v628
    %v631 = vmul.f32 %v625, %v629
    %v632 = vmul.f32 %v626, %v630
    %v633 = vmul.f32 %v549, %v631
    %v634 = vmul.f32 %v622, %v632
    %635 = vst.msk [vmem:[#allocation7] sm:$0xff] %vm54, %v633
    %636 = vst.msk [vmem:[#allocation7 + $0x8] sm:$0xff] %vm54, %v634
    // Predicated region
    $region22: #{cdim_self_attention.1} parent=1 // pred_check
      _
    $region23: #{cdim_self_attention.1} parent=1 // pred_check_branch
      %638 = sbr.rel (0) target = $region25
    $region24: #{cdim_self_attention.1} parent=1 // pred_region
      %s640 = ssub.s32 256, 256
      %641 = vsyncadd [#allocation4], %s640
      %s642 = sshll.u32 [#allocation7], 4
      %s643 = int_to_ptr.vmem [resolvable:$true] %s642
      %648 = dma.vmem_to_hbm [thread:$0]  %s643, 256, %s3, [#allocation4], 128, 128, 8
    $region25: #{cdim_self_attention.1} parent=1 // pred_fallthru
      _
    // Predicated region
    $region26: #{cdim_self_attention.1} parent=1 // pred_check
      _
    $region27: #{cdim_self_attention.1} parent=1 // pred_check_branch
      %650 = sbr.rel (0) target = $region29
    $region28: #{cdim_self_attention.1} parent=1 // pred_region
      %651 = dma.done [#allocation4], 256
    $region29: #{cdim_self_attention.1} parent=1 // pred_fallthru
      _
    %652 = vsyncpa [#allocation3], 1
    %653 = vsyncpa [#allocation6], 1
    %654 = vsyncpa [#allocation4], 1

</llo_original>
